<compile_context>
chip_gen: v7x
topology: tpu7x:2x2x1
jax: 0.10.0
libtpu: 0.0.40
codegen_flags: <defaults>
</compile_context>

<pallas_src>
import jax
import jax.numpy as jnp
from jax.experimental import pallas as pl
from jax.experimental.pallas import tpu as pltpu

NUM_SEGMENTS = 3  # nn.Embedding(3, emb_size)

# Bytes of VMEM reserved for the pipelined (double-buffered) blocks.
_VMEM_BLOCK_BUDGET = 24 << 20


def _choose_row_tile(rows, row_tile, emb_size, out_itemsize):
    """Pick a row tile that (a) fits the VMEM block budget, (b) divides
    `rows` when possible (unmasked stores, no padding, no post-slice), and
    (c) gives >= 2 grid steps so v7x's two TensorCores can both be used."""
    if rows <= 8:
        return rows

    # Per-row VMEM cost: double-buffered output row + double-buffered
    # (lane-padded) int32 id row.
    per_row = 2 * (emb_size * out_itemsize + 128 * 4)
    budget_rows = max(8, _VMEM_BLOCK_BUDGET // per_row)
    cap = max(8, (min(row_tile, rows, budget_rows) // 8) * 8)

    if rows % 8 != 0:
        # Rare (odd B*S): one full-extent block if it fits, otherwise a
        # multiple-of-8 tile whose final partial block gets masked stores.
        # Either way: no padding, no post-kernel slice.
        return rows if rows <= min(row_tile, budget_rows) else cap

    def largest_divisor(limit):
        for t in range(limit, 7, -8):
            if rows % t == 0:
                return t
        return 8

    tile = largest_divisor(cap)
    if tile == rows and rows >= 16:
        # Split the row axis so the "parallel" grid axis has >= 2 steps
        # (lets v7x shard across both TensorCores).
        tile = largest_divisor(max(8, ((rows // 2) // 8) * 8))
    return tile


def _seg_embedding_kernel(seg_ref, table_ref, out_ref):
    # seg_ref:   [T, 1] int32   (row tile of segment ids)
    # table_ref: [3, E]         (full embedding table, resident every step)
    # out_ref:   [T, E]         (row tile of output embeddings)
    seg = seg_ref[...]                                # [T, 1] int32
    tab = table_ref[...].astype(out_ref.dtype)        # tiny; no-op if same dtype
    t0 = tab[0:1, :]                                  # [1, E]
    t1 = tab[1:2, :]                                  # [1, E]
    t2 = tab[2:3, :]                                  # [1, E]
    # Two VPU selects; ids broadcast along lanes, table rows along sublanes.
    # Ids outside {0,1,2} fall back to row 0 (nn.Embedding would raise).
    out_ref[...] = jnp.where(seg == 2, t2, jnp.where(seg == 1, t1, t0))


def seg_embedding(seg, table, *, row_tile=2048, out_dtype=None):
    """seg: [B, S] int; table: [3, E] -> [B, S, E] (dtype = out_dtype or table's)."""
    B, S = seg.shape
    V, E = table.shape
    assert V == NUM_SEGMENTS
    out_dtype = table.dtype if out_dtype is None else jnp.dtype(out_dtype)
    out_itemsize = jnp.dtype(out_dtype).itemsize
    rows = B * S

    tile = _choose_row_tile(rows, row_tile, E, out_itemsize)
    grid = (pl.cdiv(rows, tile),)

    # Flatten (B, S) -> rows; keep ids as a [rows, 1] column so the block's
    # last dim equals the full array dim (layout-legal for any tile size).
    seg_flat = seg.reshape(rows, 1).astype(jnp.int32)

    # Scoped-VMEM sized to the actual double-buffered blocks plus headroom
    # (v5e default scoped limit is 16 MiB; keep well under v7x's 64 MiB).
    block_bytes = (2 * tile * (E * out_itemsize + 128 * 4)
                   + 2 * 8 * E * table.dtype.itemsize)
    vmem_limit = int(min(max(block_bytes + (8 << 20), 16 << 20), 48 << 20))

    out_flat = pl.pallas_call(
        _seg_embedding_kernel,
        out_shape=jax.ShapeDtypeStruct((rows, E), out_dtype),
        grid_spec=pltpu.PrefetchScalarGridSpec(
            num_scalar_prefetch=0,
            grid=grid,
            in_specs=[
                # per-tile segment ids
                pl.BlockSpec((tile, 1), lambda i: (i, 0)),
                # full embedding table every step (tiny: 3 x E, constant index)
                pl.BlockSpec((V, E), lambda i: (0, 0)),
            ],
            out_specs=pl.BlockSpec((tile, E), lambda i: (i, 0)),
        ),
        compiler_params=pltpu.CompilerParams(
            dimension_semantics=("parallel",),
            vmem_limit_bytes=vmem_limit),
        cost_estimate=pl.CostEstimate(
            flops=0,
            transcendentals=0,
            bytes_accessed=(rows * E * out_itemsize + rows * 4
                            + V * E * table.dtype.itemsize)),
    )(seg_flat, table)

    return out_flat.reshape(B, S, E)


if __name__ == "__main__":
    batch, seq, emb_size = 2, 8, 128   # E multiple of 128 -> unmasked stores

    key = jax.random.PRNGKey(0)
    k_table, k_seg = jax.random.split(key)

    # Deterministic synthetic parameters (mimics nn.Embedding weight).
    table = (jax.random.normal(k_table, (NUM_SEGMENTS, emb_size),
                               dtype=jnp.float32) * 0.02)
    # Segment ids in {0, 1, 2}, as produced by BERT-style preprocessing.
    seg = jax.random.randint(k_seg, (batch, seq), 0, NUM_SEGMENTS,
                             dtype=jnp.int32)

    out = seg_embedding(seg, table)
    out = jax.block_until_ready(out)

    # Reference check: plain JAX gather.
    ref = jnp.take(table, seg, axis=0)
    assert out.shape == (batch, seq, emb_size)
    assert out.dtype == table.dtype
    assert jnp.allclose(out, ref, atol=1e-6), "mismatch vs reference gather"

    print("KERNEL_OK")
</pallas_src>

<mosaic_0001>
module attributes {stable_mosaic.version = 11 : i64} {
  func.func @_seg_embedding_kernel(%arg0: i32, %arg1: memref<8x1xi32, #tpu.memory_space<vmem>>, %arg2: memref<3x128xf32, #tpu.memory_space<vmem>>, %arg3: memref<8x128xf32, #tpu.memory_space<vmem>>) attributes {dimension_semantics = [#tpu.dimension_semantics<parallel>], iteration_bounds = array<i64: 2>, scalar_prefetch = 0 : i64, scratch_operands = 0 : i64, tpu.core_type = #tpu.core_type<tc>, window_params = [{transform_indices = @transform_0, window_bounds = array<i64: 8, 1>}, {pipeline_mode = #tpu.pipeline_mode<synchronous>, transform_indices = @transform_1, window_bounds = array<i64: 3, 128>}, {transform_indices = @transform_2, window_bounds = array<i64: 8, 128>}]} {
    %c0 = arith.constant 0 : index
    %c0_0 = arith.constant 0 : index
    %0 = vector.load %arg1[%c0, %c0_0] : memref<8x1xi32, #tpu.memory_space<vmem>>, vector<8x1xi32>
    %c0_1 = arith.constant 0 : index
    %c0_2 = arith.constant 0 : index
    %1 = vector.load %arg2[%c0_1, %c0_2] : memref<3x128xf32, #tpu.memory_space<vmem>>, vector<3x128xf32>
    %2 = vector.extract_strided_slice %1 {offsets = [0, 0], sizes = [1, 128], strides = [1, 1]} : vector<3x128xf32> to vector<1x128xf32>
    %3 = vector.extract_strided_slice %1 {offsets = [1, 0], sizes = [1, 128], strides = [1, 1]} : vector<3x128xf32> to vector<1x128xf32>
    %4 = vector.extract_strided_slice %1 {offsets = [2, 0], sizes = [1, 128], strides = [1, 1]} : vector<3x128xf32> to vector<1x128xf32>
    %c2_i32 = arith.constant 2 : i32
    %5 = vector.broadcast %c2_i32 : i32 to vector<8x1xi32>
    %6 = arith.cmpi eq, %0, %5 : vector<8x1xi32>
    %c1_i32 = arith.constant 1 : i32
    %7 = vector.broadcast %c1_i32 : i32 to vector<8x1xi32>
    %8 = arith.cmpi eq, %0, %7 : vector<8x1xi32>
    %9 = vector.shape_cast %8 : vector<8x1xi1> to vector<8x1xi1>
    %10 = vector.broadcast %9 : vector<8x1xi1> to vector<8x128xi1>
    %11 = vector.shape_cast %3 : vector<1x128xf32> to vector<1x128xf32>
    %12 = vector.broadcast %11 : vector<1x128xf32> to vector<8x128xf32>
    %13 = vector.shape_cast %2 : vector<1x128xf32> to vector<1x128xf32>
    %14 = vector.broadcast %13 : vector<1x128xf32> to vector<8x128xf32>
    %15 = arith.select %10, %12, %14 : vector<8x128xi1>, vector<8x128xf32>
    %16 = vector.shape_cast %6 : vector<8x1xi1> to vector<8x1xi1>
    %17 = vector.broadcast %16 : vector<8x1xi1> to vector<8x128xi1>
    %18 = vector.shape_cast %4 : vector<1x128xf32> to vector<1x128xf32>
    %19 = vector.broadcast %18 : vector<1x128xf32> to vector<8x128xf32>
    %20 = arith.select %17, %19, %15 : vector<8x128xi1>, vector<8x128xf32>
    %c0_3 = arith.constant 0 : index
    %c0_4 = arith.constant 0 : index
    %21 = vector.load %arg3[%c0_3, %c0_4] : memref<8x128xf32, #tpu.memory_space<vmem>>, vector<8x128xf32>
    tpu.vector_store %arg3[%c0_3, %c0_4], %20 {strides = array<i32>} : memref<8x128xf32, #tpu.memory_space<vmem>>, vector<8x128xf32>,
    return
  }
  func.func @transform_0(%arg0: i32) -> (i32, i32) {
    %c0_i32 = arith.constant 0 : i32
    %c0_i32_0 = arith.constant 0 : i32
    return %arg0, %c0_i32 : i32, i32
  }
  func.func @transform_1(%arg0: i32) -> (i32, i32) {
    %c0_i32 = arith.constant 0 : i32
    %c0_i32_0 = arith.constant 0 : i32
    %c0_i32_1 = arith.constant 0 : i32
    return %c0_i32, %c0_i32_0 : i32, i32
  }
  func.func @transform_2(%arg0: i32) -> (i32, i32) {
    %c0_i32 = arith.constant 0 : i32
    %c0_i32_0 = arith.constant 0 : i32
    return %arg0, %c0_i32 : i32, i32
  }
}

</mosaic_0001>

<llo_original>
// kernel: tpu_custom_call.1
$region0: #{tpu_custom_call.1}
  #allocation0 [shape = 'u32[]', space=smem, size = 0x4, offset = 0x4, fixed_abs, tag = 'smem constant byte address 0x4 - core index']
  #allocation1 [shape = 'u32[144,128]{1,0:T(1,128)}', space=vmem, size = 0x12000, scoped, tag = 'internal scratch']
  %s0 = inlined_call_operand.vmem [shape: s32[16,1], index: 0, kind: input, shape index: {}]
  %s1 = inlined_call_operand.vmem [shape: f32[3,128], index: 1, kind: input, shape index: {}]
  %s2 = inlined_call_operand.hbm [shape: f32[16,128], index: 2, kind: output, shape index: {}]
  %s3 = sld [smem:[#allocation0]]
  $region41: #{tpu_custom_call.1} parent=0
    _
  %s5 = ssub.s32 1, %s3
  %s6 = scalar_select 0, %s5, %s3
  $region1: #{tpu_custom_call.1} parent=0
    #allocation2 [shape = 'u8[8192]{0}', space=vmem, size = 0x2000, scoped, tag = 'output window, operand 0']
    #allocation3 [shape = 's32[2]{0}', space=sflag, size = 0x8, scoped, tag = 'scoped memory for tpu_custom_call.1']
    %7 = vsyncpa [#allocation3], 0
    %s8 = scalar_lea.sflag [#allocation3], 1
    %9 = vsyncpa %s8, 0
    loop: start=0, step=1, limit=4
    $region2: #{tpu_custom_call.1} parent=1 // loop_pre_header
      _
    $region3: #{tpu_custom_call.1} parent=1 // loop_header
      %s11 = sphi 0, %s15
      %p12 = scmp.ge.s32.totalorder %s11, 4
      %s21 = sphi 0, %s23
      %s24 = sphi 0, %s21
      %s25 = sphi 0, %s24
      %s41 = sphi 0, %s25
      %s45 = sphi 0, %s45
      %s47 = sphi 0, %s45
      %s48 = sphi 0, %s47
      %s62 = sphi 0, %s48
      %s68 = sphi 0, %s70
      %s71 = sphi 0, %s68
      %s72 = sphi 0, %s71
      %s88 = sphi 0, %s72
    $region4: #{tpu_custom_call.1} parent=1 // loop_header_branch
      %14 = sbr.rel (%p12) target = $region8
    $region5: #{tpu_custom_call.1} parent=1 // loop_body
      %s16 = ssub.s32 %s11, 1
      %s17 = ssub.s32 %s11, 2
      %s18 = sadd.s32 %s11, 1
      %s19 = ssub.s32 %s11, %s18
      %p20 = scmp.eq.s32.totalorder %s19, 0
      %s22 = sadd.s32 %s21, 1
      %s23 = scalar_select %p20, %s21, %s22
      %p26 = pneg %p20
      %p27 = scmp.eq.s32.totalorder %s11, 1
      %p28 = por %p26, %p27
      %p29 = scmp.ne.s32.totalorder %s21, %s24
      %p30 = scmp.eq.s32.totalorder %s11, 0
      %p31 = por %p29, %p30
      %p32 = scmp.ne.s32.totalorder %s21, %s24
      %p33 = scmp.eq.s32.totalorder %s16, 1
      %p34 = por %p32, %p33
      %p35 = scmp.ne.s32.totalorder %s24, %s25
      %p36 = scmp.eq.s32.totalorder %s16, 0
      %p37 = por %p35, %p36
      %p38 = scmp.ne.s32.totalorder %s24, %s25
      %p39 = scmp.eq.s32.totalorder %s17, 1
      %p40 = por %p38, %p39
      %p42 = scmp.ne.s32.totalorder %s25, %s41
      %p43 = scmp.eq.s32.totalorder %s17, 0
      %p44 = por %p42, %p43
      %s46 = sadd.s32 %s45, 1
      %p49 = scmp.eq.s32.totalorder %s11, 1
      %p50 = scmp.ne.s32.totalorder %s45, %s47
      %p51 = scmp.eq.s32.totalorder %s11, 0
      %p52 = por %p50, %p51
      %p53 = scmp.ne.s32.totalorder %s45, %s47
      %p54 = scmp.eq.s32.totalorder %s16, 1
      %p55 = por %p53, %p54
      %p56 = scmp.ne.s32.totalorder %s47, %s48
      %p57 = scmp.eq.s32.totalorder %s16, 0
      %p58 = por %p56, %p57
      %p59 = scmp.ne.s32.totalorder %s47, %s48
      %p60 = scmp.eq.s32.totalorder %s17, 1
      %p61 = por %p59, %p60
      %p63 = scmp.ne.s32.totalorder %s48, %s62
      %p64 = scmp.eq.s32.totalorder %s17, 0
      %p65 = por %p63, %p64
      %s66 = ssub.s32 %s11, %s18
      %p67 = scmp.eq.s32.totalorder %s66, 0
      %s69 = sadd.s32 %s68, 1
      %s70 = scalar_select %p67, %s68, %s69
      %p73 = pneg %p67
      %p74 = scmp.eq.s32.totalorder %s11, 1
      %p75 = por %p73, %p74
      %p76 = scmp.ne.s32.totalorder %s68, %s71
      %p77 = scmp.eq.s32.totalorder %s11, 0
      %p78 = por %p76, %p77
      %p79 = scmp.ne.s32.totalorder %s68, %s71
      %p80 = scmp.eq.s32.totalorder %s16, 1
      %p81 = por %p79, %p80
      %p82 = scmp.ne.s32.totalorder %s71, %s72
      %p83 = scmp.eq.s32.totalorder %s16, 0
      %p84 = por %p82, %p83
      %p85 = scmp.ne.s32.totalorder %s71, %s72
      %p86 = scmp.eq.s32.totalorder %s17, 1
      %p87 = por %p85, %p86
      %p89 = scmp.ne.s32.totalorder %s72, %s88
      %p90 = scmp.eq.s32.totalorder %s17, 0
      %p91 = por %p89, %p90
      %p92 = scmp.le.s32.totalorder 1, %s11
      %p93 = scmp.lt.s32.totalorder %s11, 3
      %p94 = pnand %p92, %p93
      %p95 = pneg %p94
      // Predicated region
      $region9: #{tpu_custom_call.1} parent=5 // pred_check
        _
      $region10: #{tpu_custom_call.1} parent=5 // pred_check_branch
        %97 = sbr.rel (%p94) target = $region12
      $region11: #{tpu_custom_call.1} parent=5 // pred_region
        %s98 = ssub.s32 %s11, 1
        // Predicated region
        $region13: #{tpu_custom_call.1} parent=11 // pred_check
          %p99 = pneg %p58
        $region14: #{tpu_custom_call.1} parent=11 // pred_check_branch
          %101 = sbr.rel (%p99) target = $region16
        $region15: #{tpu_custom_call.1} parent=11 // pred_region
          _
        $region16: #{tpu_custom_call.1} parent=11 // pred_fallthru
          _
      $region12: #{tpu_custom_call.1} parent=5 // pred_fallthru
        _
      %p102 = scmp.lt.s32.totalorder %s11, 2
      // Predicated region
      $region17: #{tpu_custom_call.1} parent=5 // pred_check
        %p103 = pneg %p102
      $region18: #{tpu_custom_call.1} parent=5 // pred_check_branch
        %105 = sbr.rel (%p103) target = $region20
      $region19: #{tpu_custom_call.1} parent=5 // pred_region
        // Predicated region
        $region21: #{tpu_custom_call.1} parent=19 // pred_check
          %p106 = pneg %p31
        $region22: #{tpu_custom_call.1} parent=19 // pred_check_branch
          %108 = sbr.rel (%p106) target = $region24
        $region23: #{tpu_custom_call.1} parent=19 // pred_region
          %p109 = scmp.lt.s32.totalorder %s11, 1
          %s110 = scalar_select %p109, %s11, 1
          %s111 = smul.addr %s110, 8
          %s112 = scalar_lea.vmem %s0, %s111
        $region24: #{tpu_custom_call.1} parent=19 // pred_fallthru
          _
      $region20: #{tpu_custom_call.1} parent=5 // pred_fallthru
        _
      %p113 = scmp.le.s32.totalorder 1, %s11
      %p114 = scmp.lt.s32.totalorder %s11, 3
      %p115 = pnand %p113, %p114
      %p116 = pneg %p115
      // Predicated region
      $region25: #{tpu_custom_call.1} parent=5 // pred_check
        _
      $region26: #{tpu_custom_call.1} parent=5 // pred_check_branch
        %118 = sbr.rel (%p115) target = $region28
      $region27: #{tpu_custom_call.1} parent=5 // pred_region
        %s119 = ssub.s32 %s11, 1
        %p120 = scmp.lt.s32.totalorder %s16, 1
        %s121 = scalar_select %p120, %s16, 1
        %s122 = smul.addr %s121, 8
        %s123 = scalar_lea.vmem %s0, %s122
        %p124 = pneg %p37
        %p125 = pneg %p34
        %p126 = pneg %p58
        %p127 = pneg %p55
        %p128 = pneg %p84
        %p129 = pneg %p81
        %s130 = sand.u32 %s71, 1
        %s131 = scalar_lea.sflag [#allocation3], %s130
        %s132 = sand.u32 %s71, 1
        %s133 = smul.addr %s132, 8
        %s134 = scalar_lea.vmem [#allocation2], %s133
        %p135 = scmp.lt.s32.totalorder %s16, 1
        %s136 = scalar_select %p135, %s16, 1
        %s137 = smul.addr %s136, 8
        %s138 = scalar_lea.vmem %s0, %s137
        %v139 = vld [vmem:[%s138] sm:$0xff]
        %v140 = vld [vmem:[%s1] sm:$0x7]
        %vm141 = vcmp.eq.s32.totalorder %v139, 2
        %vm142 = vcmp.eq.s32.totalorder %v139, 1
        %v143 = vsel %vm142, 1, 0
        %144 = vset.pattern.permute.xlu0 0
        %145 = vperm.xlu0 %144, %v143
        %v146 = vpop.permute.xlu0 %145
        %vm147 = vcmp.eq.s32.totalorder %v146, 1
        %v148 = vlaneseq
        %v149 = vshrl.u32 %v148, 7
        %v150 = vsub.s32 1, %v149
        %v151 = vrot.slane %v140, %v150
        %v152 = vlaneseq
        %v153 = vshrl.u32 %v152, 7
        %v154 = vsub.s32 0, %v153
        %v155 = vrot.slane %v140, %v154
        %v156 = vsel %vm147, %v151, %v155
        %v157 = vsel %vm141, 1, 0
        %158 = vset.pattern.permute.xlu0 0
        %159 = vperm.xlu0 %158, %v157
        %v160 = vpop.permute.xlu0 %159
        %vm161 = vcmp.eq.s32.totalorder %v160, 1
        %v162 = vlaneseq
        %v163 = vshrl.u32 %v162, 7
        %v164 = vsub.s32 2, %v163
        %v165 = vrot.slane %v140, %v164
        %v166 = vsel %vm161, %v165, %v156
        %167 = vst [vmem:[%s134] sm:$0xff] %v166
        %s168 = sand.u32 %s71, 1
        %s169 = scalar_lea.sflag [#allocation3], %s168
        %s170 = sand.u32 %s71, 1
        %s171 = smul.addr %s170, 8
        %s172 = scalar_lea.vmem [#allocation2], %s171
        // Predicated region
        $region29: #{tpu_custom_call.1} parent=27 // pred_check
          %p173 = pneg %p81
        $region30: #{tpu_custom_call.1} parent=27 // pred_check_branch
          %175 = sbr.rel (%p173) target = $region32
        $region31: #{tpu_custom_call.1} parent=27 // pred_region
          %s177 = ssub.s32 128, 128
          %178 = vsyncadd %s169, %s177
          %s179 = smul.addr %s16, 128
          %s180 = scalar_lea.hbm %s2, %s179
          %s182 = sshll.u32 %s172, 4
          %s183 = int_to_ptr.vmem [resolvable:$true] %s182
          %185 = dma.vmem_to_hbm [thread:$0]  %s183, 128, %s180, %s169
        $region32: #{tpu_custom_call.1} parent=27 // pred_fallthru
          _
      $region28: #{tpu_custom_call.1} parent=5 // pred_fallthru
        _
      %p186 = scmp.le.s32.totalorder 2, %s11
      // Predicated region
      $region33: #{tpu_custom_call.1} parent=5 // pred_check
        %p187 = pneg %p186
      $region34: #{tpu_custom_call.1} parent=5 // pred_check_branch
        %189 = sbr.rel (%p187) target = $region36
      $region35: #{tpu_custom_call.1} parent=5 // pred_region
        %s190 = ssub.s32 %s11, 2
        // Predicated region
        $region37: #{tpu_custom_call.1} parent=35 // pred_check
          %p191 = pneg %p87
        $region38: #{tpu_custom_call.1} parent=35 // pred_check_branch
          %193 = sbr.rel (%p191) target = $region40
        $region39: #{tpu_custom_call.1} parent=35 // pred_region
          %s194 = sand.u32 %s72, 1
          %s195 = scalar_lea.sflag [#allocation3], %s194
          %s196 = sand.u32 %s72, 1
          %s197 = smul.addr %s196, 8
          %s198 = scalar_lea.vmem [#allocation2], %s197
          %199 = dma.done %s195, 128
        $region40: #{tpu_custom_call.1} parent=35 // pred_fallthru
          _
      $region36: #{tpu_custom_call.1} parent=5 // pred_fallthru
        _
    $region6: #{tpu_custom_call.1} parent=1 // loop_footer
      %s15 = sadd.s32 1, %s11
    $region7: #{tpu_custom_call.1} parent=1 // loop_footer_branch
      %10 = sbr.rel target = $region3
    $region8: #{tpu_custom_call.1} parent=1 // loop_exit
      _
    %200 = vsyncpa [#allocation3], 1
    %s201 = scalar_lea.sflag [#allocation3], 1
    %202 = vsyncpa %s201, 1

</llo_original>
